<compile_context>
chip_gen: v5e
topology: v5e:2x2
jax: 0.10.0
libtpu: 0.0.40
codegen_flags: <defaults>
</compile_context>

<pallas_src>
import functools
import math

import jax
import jax.numpy as jnp
from jax.experimental import pallas as pl
from jax.experimental.pallas import tpu as pltpu

LN_EPS = 1e-5
VMEM_LIMIT = 48 * 1024 * 1024   # headroom under v7x's 64 MiB physical VMEM


# ------------------------------ tiling helpers -------------------------------

def _tile(dim, target, align):
    """Block size <= max(target, align).  If dim <= target the whole dim is a
    single block (always legal).  Otherwise the block is `target` rounded down
    to `align` and the caller zero-pads the array to a multiple of it — there
    is NO full-dimension fallback (avoids vocab-sized VMEM blocks)."""
    if dim <= target:
        return dim
    return max(align, (target // align) * align)


def _pad_axis(x, axis, multiple):
    pad = (-x.shape[axis]) % multiple
    if pad == 0:
        return x
    widths = [(0, 0)] * x.ndim
    widths[axis] = (0, pad)
    return jnp.pad(x, widths)


# --------------------------- tiled linear (+bias) ----------------------------

def _matmul_kernel(x_ref, w_ref, b_ref, o_ref, acc_ref):
    k = pl.program_id(2)

    @pl.when(k == 0)
    def _():
        acc_ref[...] = jnp.zeros_like(acc_ref)

    acc_ref[...] += jnp.dot(x_ref[...].astype(jnp.bfloat16), w_ref[...],
                            preferred_element_type=jnp.float32)

    @pl.when(k == pl.num_programs(2) - 1)
    def _():
        o_ref[...] = (acc_ref[...]
                      + b_ref[...].astype(jnp.float32)).astype(o_ref.dtype)


def linear_tiled(x, w, b, tm=256, tn=512, tk=1024):
    """x:[M,K] f32 @ w:[K,N] bf16 (pre-transposed [in,out]) + b:[N] f32."""
    M, K = x.shape
    N = w.shape[1]
    tm = _tile(M, tm, 16)       # 16: bf16 sublane packing
    tn = _tile(N, tn, 128)
    tk = _tile(K, tk, 128)
    xp = _pad_axis(_pad_axis(x, 0, tm), 1, tk)
    wp = _pad_axis(_pad_axis(w, 0, tk), 1, tn)
    bp = _pad_axis(b.reshape(1, N), 1, tn)
    Mp, Kp = xp.shape
    Np = wp.shape[1]
    out = pl.pallas_call(
        _matmul_kernel,
        out_shape=jax.ShapeDtypeStruct((Mp, Np), x.dtype),
        grid=(Mp // tm, Np // tn, Kp // tk),
        in_specs=[
            pl.BlockSpec((tm, tk), lambda i, j, k: (i, k)),
            pl.BlockSpec((tk, tn), lambda i, j, k: (k, j)),
            pl.BlockSpec((1, tn), lambda i, j, k: (0, j)),
        ],
        out_specs=pl.BlockSpec((tm, tn), lambda i, j, k: (i, j)),
        scratch_shapes=[pltpu.VMEM((tm, tn), jnp.float32)],
        compiler_params=pltpu.CompilerParams(
            dimension_semantics=("parallel", "parallel", "arbitrary"),
            vmem_limit_bytes=VMEM_LIMIT),
        cost_estimate=pl.CostEstimate(
            flops=2 * Mp * Np * Kp, transcendentals=0,
            bytes_accessed=xp.size * 4 + wp.size * 2 + Mp * Np * 4),
    )(xp, wp, bp)
    if (Mp, Np) != (M, N):
        out = out[:M, :N]
    return out


# ------------------ fused out-proj + residual + LayerNorm --------------------

def _proj_res_ln_kernel(x_ref, w_ref, b_ref, r_ref, g_ref, be_ref, o_ref, *, eps):
    y = jnp.dot(x_ref[...].astype(jnp.bfloat16), w_ref[...],
                preferred_element_type=jnp.float32)
    y = y + b_ref[...].astype(jnp.float32) + r_ref[...].astype(jnp.float32)
    mu = jnp.mean(y, axis=-1, keepdims=True)
    var = jnp.mean(jnp.square(y - mu), axis=-1, keepdims=True)
    yn = (y - mu) * jax.lax.rsqrt(var + eps)
    o_ref[...] = (yn * g_ref[...] + be_ref[...]).astype(o_ref.dtype)


def proj_res_ln(x, w, b, residual, gamma, beta, eps=LN_EPS, tm=256):
    """LayerNorm(residual + x @ w + b) — one HBM round trip for the sublayer.
    w:[D,D] stays untiled (bf16; 0.5 MiB at D=512) — fine on all generations.
    TODO(synk): add a K-tile axis for very large d_model on v7x."""
    M, K = x.shape
    N = w.shape[1]
    tm = _tile(M, tm, 16)
    xp = _pad_axis(x, 0, tm)
    rp = _pad_axis(residual, 0, tm)
    Mp = xp.shape[0]
    out = pl.pallas_call(
        functools.partial(_proj_res_ln_kernel, eps=eps),
        out_shape=jax.ShapeDtypeStruct((Mp, N), x.dtype),
        grid=(Mp // tm,),
        in_specs=[
            pl.BlockSpec((tm, K), lambda i: (i, 0)),
            pl.BlockSpec((K, N), lambda i: (0, 0)),
            pl.BlockSpec((1, N), lambda i: (0, 0)),
            pl.BlockSpec((tm, N), lambda i: (i, 0)),
            pl.BlockSpec((1, N), lambda i: (0, 0)),
            pl.BlockSpec((1, N), lambda i: (0, 0)),
        ],
        out_specs=pl.BlockSpec((tm, N), lambda i: (i, 0)),
        compiler_params=pltpu.CompilerParams(
            dimension_semantics=("parallel",), vmem_limit_bytes=VMEM_LIMIT),
    )(xp, w, b.reshape(1, N), rp, gamma.reshape(1, N), beta.reshape(1, N))
    return out[:M] if Mp != M else out


# --------------- fused FFN (lin1->relu->lin2) + residual + LN ----------------

def _ffn_res_ln_kernel(x_ref, w1_ref, b1_ref, w2_ref, b2_ref, g_ref, be_ref,
                       o_ref, acc_ref, *, eps):
    f = pl.program_id(1)

    @pl.when(f == 0)
    def _():
        acc_ref[...] = jnp.zeros_like(acc_ref)

    h = jnp.dot(x_ref[...].astype(jnp.bfloat16), w1_ref[...],
                preferred_element_type=jnp.float32)
    h = jnp.maximum(h + b1_ref[...].astype(jnp.float32), 0.0)
    acc_ref[...] += jnp.dot(h.astype(jnp.bfloat16), w2_ref[...],
                            preferred_element_type=jnp.float32)

    @pl.when(f == pl.num_programs(1) - 1)
    def _():
        y = (acc_ref[...] + b2_ref[...].astype(jnp.float32)
             + x_ref[...].astype(jnp.float32))   # residual == FFN input
        mu = jnp.mean(y, axis=-1, keepdims=True)
        var = jnp.mean(jnp.square(y - mu), axis=-1, keepdims=True)
        yn = (y - mu) * jax.lax.rsqrt(var + eps)
        o_ref[...] = (yn * g_ref[...] + be_ref[...]).astype(o_ref.dtype)


def ffn_res_ln(x, w1, b1, w2, b2, gamma, beta, eps=LN_EPS, tm=128, tf=512):
    """LayerNorm(x + relu(x@w1+b1)@w2 + b2); [M, dim_ff] never hits HBM.
    Zero-padded dim_ff blocks contribute exactly zero (relu(0)=0, zero w2 rows)."""
    M, D = x.shape
    F = w1.shape[1]
    tm = _tile(M, tm, 16)
    tf = _tile(F, tf, 128)
    xp = _pad_axis(x, 0, tm)
    w1p = _pad_axis(w1, 1, tf)
    b1p = _pad_axis(b1.reshape(1, F), 1, tf)
    w2p = _pad_axis(w2, 0, tf)
    Mp = xp.shape[0]
    Fp = w1p.shape[1]
    out = pl.pallas_call(
        functools.partial(_ffn_res_ln_kernel, eps=eps),
        out_shape=jax.ShapeDtypeStruct((Mp, D), x.dtype),
        grid=(Mp // tm, Fp // tf),
        in_specs=[
            pl.BlockSpec((tm, D), lambda i, f: (i, 0)),
            pl.BlockSpec((D, tf), lambda i, f: (0, f)),
            pl.BlockSpec((1, tf), lambda i, f: (0, f)),
            pl.BlockSpec((tf, D), lambda i, f: (f, 0)),
            pl.BlockSpec((1, D), lambda i, f: (0, 0)),
            pl.BlockSpec((1, D), lambda i, f: (0, 0)),
            pl.BlockSpec((1, D), lambda i, f: (0, 0)),
        ],
        out_specs=pl.BlockSpec((tm, D), lambda i, f: (i, 0)),
        scratch_shapes=[pltpu.VMEM((tm, D), jnp.float32)],
        compiler_params=pltpu.CompilerParams(
            dimension_semantics=("parallel", "arbitrary"),
            vmem_limit_bytes=VMEM_LIMIT),
        cost_estimate=pl.CostEstimate(
            flops=4 * Mp * D * Fp, transcendentals=0,
            bytes_accessed=xp.size * 4 + (w1p.size + w2p.size) * 2 + Mp * D * 4),
    )(xp, w1p, b1p, w2p, b2.reshape(1, D),
      gamma.reshape(1, D), beta.reshape(1, D))
    return out[:M] if Mp != M else out


# ---------------------- standalone (no-residual) LayerNorm -------------------

def _ln_kernel(x_ref, g_ref, b_ref, o_ref, *, eps):
    x = x_ref[...].astype(jnp.float32)
    mu = jnp.mean(x, axis=-1, keepdims=True)
    var = jnp.mean(jnp.square(x - mu), axis=-1, keepdims=True)
    y = (x - mu) * jax.lax.rsqrt(var + eps)
    o_ref[...] = (y * g_ref[...] + b_ref[...]).astype(o_ref.dtype)


def layer_norm(x, gamma, beta, eps=LN_EPS, tm=256):
    M, D = x.shape
    tm = _tile(M, tm, 8)
    xp = _pad_axis(x, 0, tm)
    Mp = xp.shape[0]
    out = pl.pallas_call(
        functools.partial(_ln_kernel, eps=eps),
        out_shape=jax.ShapeDtypeStruct((Mp, D), x.dtype),
        grid=(Mp // tm,),
        in_specs=[
            pl.BlockSpec((tm, D), lambda i: (i, 0)),
            pl.BlockSpec((1, D), lambda i: (0, 0)),
            pl.BlockSpec((1, D), lambda i: (0, 0)),
        ],
        out_specs=pl.BlockSpec((tm, D), lambda i: (i, 0)),
        compiler_params=pltpu.CompilerParams(
            dimension_semantics=("parallel",), vmem_limit_bytes=VMEM_LIMIT),
    )(xp, gamma.reshape(1, D), beta.reshape(1, D))
    return out[:M] if Mp != M else out


# ------------------- flash-style multi-head attention ------------------------

def _flash_attn_kernel(q_ref, k_ref, v_ref, o_ref, m_sc, l_sc, acc_sc, *,
                       scale, kv_len):
    kv = pl.program_id(2)

    @pl.when(kv == 0)
    def _():
        m_sc[...] = jnp.full_like(m_sc, -jnp.inf)
        l_sc[...] = jnp.zeros_like(l_sc)
        acc_sc[...] = jnp.zeros_like(acc_sc)

    q = q_ref[0].astype(jnp.bfloat16)          # (tq, Dh)
    k = k_ref[0].astype(jnp.bfloat16)          # (tkv, Dh)
    s = jax.lax.dot_general(q, k, (((1,), (1,)), ((), ())),
                            preferred_element_type=jnp.float32) * scale

    # Mask zero-padded KV rows (sequence padded up to a tile multiple).
    col = jax.lax.broadcasted_iota(jnp.int32, s.shape, 1) + kv * s.shape[-1]
    s = jnp.where(col < kv_len, s, -jnp.inf)

    m_prev = m_sc[...]
    m_new = jnp.maximum(m_prev, jnp.max(s, axis=-1, keepdims=True))
    alpha = jnp.exp(m_prev - m_new)
    p = jnp.exp(s - m_new)
    l_sc[...] = alpha * l_sc[...] + jnp.sum(p, axis=-1, keepdims=True)
    acc_sc[...] = alpha * acc_sc[...] + jnp.dot(
        p.astype(jnp.bfloat16), v_ref[0].astype(jnp.bfloat16),
        preferred_element_type=jnp.float32)
    m_sc[...] = m_new

    @pl.when(kv == pl.num_programs(2) - 1)
    def _():
        # Exact division (not approx reciprocal) for closer parity with PyTorch.
        o_ref[0] = (acc_sc[...] / l_sc[...]).astype(o_ref.dtype)


def mha_attention(q, k, v, nhead, tq=256, tkv=512):
    """q:[B,Sq,D], k/v:[B,Sk,D] -> [B,Sq,D].  Flash-style online softmax,
    grid = (B*nhead, Sq_tiles, KV_tiles); head split/merge is wrapper-side
    layout plumbing (no per-head Python loop or concat inside the kernel)."""
    B, Sq, D = q.shape
    Sk = k.shape[1]
    Dh = D // nhead
    scale = 1.0 / math.sqrt(Dh)

    def split_heads(x, S):
        x = x.reshape(B, S, nhead, Dh)
        return jnp.transpose(x, (0, 2, 1, 3)).reshape(B * nhead, S, Dh)

    qh = split_heads(q, Sq)
    kh = split_heads(k, Sk)
    vh = split_heads(v, Sk)

    tq = _tile(Sq, tq, 8)
    tkv = _tile(Sk, tkv, 8)
    qh = _pad_axis(qh, 1, tq)
    kh = _pad_axis(kh, 1, tkv)
    vh = _pad_axis(vh, 1, tkv)
    BH = B * nhead
    Sqp = qh.shape[1]
    Skp = kh.shape[1]

    out = pl.pallas_call(
        functools.partial(_flash_attn_kernel, scale=scale, kv_len=Sk),
        out_shape=jax.ShapeDtypeStruct((BH, Sqp, Dh), q.dtype),
        grid=(BH, Sqp // tq, Skp // tkv),
        in_specs=[
            pl.BlockSpec((1, tq, Dh), lambda b, i, j: (b, i, 0)),
            pl.BlockSpec((1, tkv, Dh), lambda b, i, j: (b, j, 0)),
            pl.BlockSpec((1, tkv, Dh), lambda b, i, j: (b, j, 0)),
        ],
        out_specs=pl.BlockSpec((1, tq, Dh), lambda b, i, j: (b, i, 0)),
        scratch_shapes=[pltpu.VMEM((tq, 1), jnp.float32),
                        pltpu.VMEM((tq, 1), jnp.float32),
                        pltpu.VMEM((tq, Dh), jnp.float32)],
        compiler_params=pltpu.CompilerParams(
            dimension_semantics=("parallel", "parallel", "arbitrary"),
            vmem_limit_bytes=VMEM_LIMIT),
        cost_estimate=pl.CostEstimate(
            flops=4 * BH * Sqp * Skp * Dh,
            transcendentals=BH * Sqp * Skp,
            bytes_accessed=4 * (qh.size + kh.size + vh.size + BH * Sqp * Dh)),
    )(qh, kh, vh)

    out = out[:, :Sq, :].reshape(B, nhead, Sq, Dh)
    return jnp.transpose(out, (0, 2, 1, 3)).reshape(B, Sq, D)


# ------------------------------ model (glue) ---------------------------------

def encoder_layer(x, B, S, D, p, nhead, eps):
    sa = p["self_attn"]
    # TODO(synk): the [M, 3D] qkv intermediate still round-trips HBM; fusing the
    # fused QKV projection directly into the attention kernel would remove it.
    qkv = linear_tiled(x, sa["w_qkv"], sa["b_qkv"])             # [B*S, 3D]
    q = qkv[:, :D].reshape(B, S, D)
    k = qkv[:, D:2 * D].reshape(B, S, D)
    v = qkv[:, 2 * D:].reshape(B, S, D)
    attn = mha_attention(q, k, v, nhead)                        # [B, S, D]
    x = proj_res_ln(attn.reshape(B * S, D), sa["w_o"], sa["b_o"], x,
                    p["norm1_w"], p["norm1_b"], eps)
    x = ffn_res_ln(x, p["w1"], p["b1"], p["w2"], p["b2"],
                   p["norm2_w"], p["norm2_b"], eps)
    return x


def decoder_layer(x, mem, B, St, Ss, D, p, nhead, eps):
    sa = p["self_attn"]
    qkv = linear_tiled(x, sa["w_qkv"], sa["b_qkv"])             # [B*St, 3D]
    q = qkv[:, :D].reshape(B, St, D)
    k = qkv[:, D:2 * D].reshape(B, St, D)
    v = qkv[:, 2 * D:].reshape(B, St, D)
    attn = mha_attention(q, k, v, nhead)
    x = proj_res_ln(attn.reshape(B * St, D), sa["w_o"], sa["b_o"], x,
                    p["norm1_w"], p["norm1_b"], eps)

    ca = p["cross_attn"]
    q = linear_tiled(x, ca["w_q"], ca["b_q"]).reshape(B, St, D)
    kv = linear_tiled(mem, ca["w_kv"], ca["b_kv"])              # [B*Ss, 2D]
    k = kv[:, :D].reshape(B, Ss, D)
    v = kv[:, D:].reshape(B, Ss, D)
    attn = mha_attention(q, k, v, nhead)
    x = proj_res_ln(attn.reshape(B * St, D), ca["w_o"], ca["b_o"], x,
                    p["norm2_w"], p["norm2_b"], eps)

    x = ffn_res_ln(x, p["w1"], p["b1"], p["w2"], p["b2"],
                   p["norm3_w"], p["norm3_b"], eps)
    return x


def transformer_forward(params, src_ids, tgt_ids, nhead, eps=LN_EPS):
    emb = params["embedding"]
    D = emb.shape[1]
    # TODO(synk): embedding lookup (data-dependent gather) kept in plain JAX.
    src = jnp.take(emb, src_ids, axis=0)        # [B, Ss, D]
    tgt = jnp.take(emb, tgt_ids, axis=0)        # [B, St, D]
    B, Ss, _ = src.shape
    St = tgt.shape[1]

    mem = src.reshape(B * Ss, D)
    for p in params["enc"]:
        mem = encoder_layer(mem, B, Ss, D, p, nhead, eps)
    mem = layer_norm(mem, params["enc_norm_w"], params["enc_norm_b"], eps)

    x = tgt.reshape(B * St, D)
    for p in params["dec"]:
        x = decoder_layer(x, mem, B, St, Ss, D, p, nhead, eps)
    x = layer_norm(x, params["dec_norm_w"], params["dec_norm_b"], eps)

    # Weight-streaming vocab projection: M is one block, wide lane-dense tn.
    logits = linear_tiled(x, params["fc_w"], params["fc_b"],
                          tm=256, tn=2048, tk=1024)
    return logits.reshape(B, St, -1)


# ----------------------------- parameter init --------------------------------
# Weights are stored pre-transposed ([in, out]) and in bf16 (MXU operand dtype,
# halves HBM weight traffic); biases / LN params / embedding stay f32.

def init_params(key, vocab_size, d_model, nhead, num_layers, dim_ff):
    keys = iter(jax.random.split(key, 4096))

    def nrm(shape, scale=0.02, dtype=jnp.bfloat16):
        return (jax.random.normal(next(keys), shape, jnp.float32) * scale
                ).astype(dtype)

    def zeros(shape):
        return jnp.zeros(shape, jnp.float32)

    def ones(shape):
        return jnp.ones(shape, jnp.float32)

    def mha_self():
        return dict(
            w_qkv=nrm((d_model, 3 * d_model)), b_qkv=zeros((3 * d_model,)),
            w_o=nrm((d_model, d_model)), b_o=zeros((d_model,)),
        )

    def mha_cross():
        return dict(
            w_q=nrm((d_model, d_model)), b_q=zeros((d_model,)),
            w_kv=nrm((d_model, 2 * d_model)), b_kv=zeros((2 * d_model,)),
            w_o=nrm((d_model, d_model)), b_o=zeros((d_model,)),
        )

    def ffn():
        return dict(
            w1=nrm((d_model, dim_ff)), b1=zeros((dim_ff,)),
            w2=nrm((dim_ff, d_model)), b2=zeros((d_model,)),
        )

    def enc_layer():
        d = dict(self_attn=mha_self())
        d.update(ffn())
        d.update(norm1_w=ones((d_model,)), norm1_b=zeros((d_model,)),
                 norm2_w=ones((d_model,)), norm2_b=zeros((d_model,)))
        return d

    def dec_layer():
        d = dict(self_attn=mha_self(), cross_attn=mha_cross())
        d.update(ffn())
        d.update(norm1_w=ones((d_model,)), norm1_b=zeros((d_model,)),
                 norm2_w=ones((d_model,)), norm2_b=zeros((d_model,)),
                 norm3_w=ones((d_model,)), norm3_b=zeros((d_model,)))
        return d

    return dict(
        embedding=nrm((vocab_size, d_model), scale=1.0, dtype=jnp.float32),
        enc=[enc_layer() for _ in range(num_layers)],
        dec=[dec_layer() for _ in range(num_layers)],
        enc_norm_w=ones((d_model,)), enc_norm_b=zeros((d_model,)),
        dec_norm_w=ones((d_model,)), dec_norm_b=zeros((d_model,)),
        fc_w=nrm((d_model, vocab_size)), fc_b=zeros((vocab_size,)),
    )


# ---------------------------------- main --------------------------------------

if __name__ == "__main__":
    # Small shapes consistent with the module's forward (src/tgt token ids).
    B, S_SRC, S_TGT = 2, 8, 8
    VOCAB, D_MODEL, NHEAD, NUM_LAYERS, DIM_FF = 64, 32, 4, 2, 64

    key = jax.random.PRNGKey(0)
    pkey, skey, tkey = jax.random.split(key, 3)

    params = init_params(pkey, VOCAB, D_MODEL, NHEAD, NUM_LAYERS, DIM_FF)
    src = jax.random.randint(skey, (B, S_SRC), 0, VOCAB, dtype=jnp.int32)
    tgt = jax.random.randint(tkey, (B, S_TGT), 0, VOCAB, dtype=jnp.int32)

    out = transformer_forward(params, src, tgt, NHEAD)
    out = jax.block_until_ready(out)

    assert out.shape == (B, S_TGT, VOCAB), out.shape
    assert out.dtype == jnp.float32
    assert bool(jnp.all(jnp.isfinite(out)))
    print("KERNEL_OK")
</pallas_src>

<mosaic_0001>
module attributes {stable_mosaic.version = 11 : i64} {
  func.func @_matmul_kernel(%arg0: i32, %arg1: i32, %arg2: i32, %arg3: memref<16x32xf32, #tpu.memory_space<vmem>>, %arg4: memref<32x96xbf16, #tpu.memory_space<vmem>>, %arg5: memref<1x96xf32, #tpu.memory_space<vmem>>, %arg6: memref<16x96xf32, #tpu.memory_space<vmem>>, %arg7: memref<16x96xf32, #tpu.memory_space<vmem>>) attributes {dimension_semantics = [#tpu.dimension_semantics<parallel>, #tpu.dimension_semantics<parallel>, #tpu.dimension_semantics<arbitrary>], iteration_bounds = array<i64: 1, 1, 1>, scalar_prefetch = 0 : i64, scratch_operands = 1 : i64, tpu.core_type = #tpu.core_type<tc>, window_params = [{transform_indices = @transform_0, window_bounds = array<i64: 16, 32>}, {transform_indices = @transform_1, window_bounds = array<i64: 32, 96>}, {transform_indices = @transform_2, window_bounds = array<i64: 1, 96>}, {transform_indices = @transform_3, window_bounds = array<i64: 16, 96>}]} {
    %c0_i32 = arith.constant 0 : i32
    %0 = arith.cmpi eq, %arg2, %c0_i32 : i32
    %1 = arith.extui %0 : i1 to i32
    %c0_i32_0 = arith.constant 0 : i32
    %2 = arith.cmpi ne, %1, %c0_i32_0 : i32
    scf.if %2 {
      %cst_10 = arith.constant 0.000000e+00 : f32
      %13 = vector.broadcast %cst_10 : f32 to vector<16x96xf32>
      %c0_11 = arith.constant 0 : index
      %c0_12 = arith.constant 0 : index
      %14 = vector.load %arg7[%c0_11, %c0_12] : memref<16x96xf32, #tpu.memory_space<vmem>>, vector<16x96xf32>
      tpu.vector_store %arg7[%c0_11, %c0_12], %13 {strides = array<i32>} : memref<16x96xf32, #tpu.memory_space<vmem>>, vector<16x96xf32>,
    } else {
    }
    %c0 = arith.constant 0 : index
    %c0_1 = arith.constant 0 : index
    %3 = vector.load %arg7[%c0, %c0_1] : memref<16x96xf32, #tpu.memory_space<vmem>>, vector<16x96xf32>
    %c0_2 = arith.constant 0 : index
    %c0_3 = arith.constant 0 : index
    %4 = vector.load %arg3[%c0_2, %c0_3] : memref<16x32xf32, #tpu.memory_space<vmem>>, vector<16x32xf32>
    %5 = arith.truncf %4 : vector<16x32xf32> to vector<16x32xbf16>
    %c0_4 = arith.constant 0 : index
    %c0_5 = arith.constant 0 : index
    %6 = vector.load %arg4[%c0_4, %c0_5] : memref<32x96xbf16, #tpu.memory_space<vmem>>, vector<32x96xbf16>
    %cst = arith.constant dense<0.000000e+00> : vector<16x96xf32>
    %7 = tpu.matmul %5, %6, %cst {dimension_numbers = #tpu.dot_dimension_numbers<[1], [0], [0], [1], [0, 0, 1, 1], [], []>} : vector<16x32xbf16>, vector<32x96xbf16>, vector<16x96xf32> -> vector<16x96xf32>
    %8 = arith.addf %3, %7 : vector<16x96xf32>
    %c0_6 = arith.constant 0 : index
    %c0_7 = arith.constant 0 : index
    %9 = vector.load %arg7[%c0_6, %c0_7] : memref<16x96xf32, #tpu.memory_space<vmem>>, vector<16x96xf32>
    tpu.vector_store %arg7[%c0_6, %c0_7], %8 {strides = array<i32>} : memref<16x96xf32, #tpu.memory_space<vmem>>, vector<16x96xf32>,
    %c0_i32_8 = arith.constant 0 : i32
    %10 = arith.cmpi eq, %arg2, %c0_i32_8 : i32
    %11 = arith.extui %10 : i1 to i32
    %c0_i32_9 = arith.constant 0 : i32
    %12 = arith.cmpi ne, %11, %c0_i32_9 : i32
    scf.if %12 {
      %c0_10 = arith.constant 0 : index
      %c0_11 = arith.constant 0 : index
      %13 = vector.load %arg7[%c0_10, %c0_11] : memref<16x96xf32, #tpu.memory_space<vmem>>, vector<16x96xf32>
      %c0_12 = arith.constant 0 : index
      %c0_13 = arith.constant 0 : index
      %14 = vector.load %arg5[%c0_12, %c0_13] : memref<1x96xf32, #tpu.memory_space<vmem>>, vector<1x96xf32>
      %15 = vector.broadcast %14 : vector<1x96xf32> to vector<16x96xf32>
      %16 = arith.addf %13, %15 : vector<16x96xf32>
      %c0_14 = arith.constant 0 : index
      %c0_15 = arith.constant 0 : index
      %17 = vector.load %arg6[%c0_14, %c0_15] : memref<16x96xf32, #tpu.memory_space<vmem>>, vector<16x96xf32>
      tpu.vector_store %arg6[%c0_14, %c0_15], %16 {strides = array<i32>} : memref<16x96xf32, #tpu.memory_space<vmem>>, vector<16x96xf32>,
    } else {
    }
    return
  }
  func.func @transform_0(%arg0: i32, %arg1: i32, %arg2: i32) -> (i32, i32) {
    %c0_i32 = arith.constant 0 : i32
    return %arg0, %arg2 : i32, i32
  }
  func.func @transform_1(%arg0: i32, %arg1: i32, %arg2: i32) -> (i32, i32) {
    %c0_i32 = arith.constant 0 : i32
    return %arg2, %arg1 : i32, i32
  }
  func.func @transform_2(%arg0: i32, %arg1: i32, %arg2: i32) -> (i32, i32) {
    %c0_i32 = arith.constant 0 : i32
    %c0_i32_0 = arith.constant 0 : i32
    return %c0_i32, %arg1 : i32, i32
  }
  func.func @transform_3(%arg0: i32, %arg1: i32, %arg2: i32) -> (i32, i32) {
    %c0_i32 = arith.constant 0 : i32
    return %arg0, %arg1 : i32, i32
  }
}

</mosaic_0001>

<llo_original>
// kernel: tpu_custom_call.1
$region0: #{tpu_custom_call.1}
  #allocation0 [shape = 'u32[]', space=smem, size = 0x4, offset = 0x4, fixed_abs, tag = 'smem constant byte address 0x4 - core index']
  #allocation1 [shape = 'u32[72,128]{1,0:T(1,128)}', space=vmem, size = 0x9000, scoped, tag = 'internal scratch']
  #allocation2 [shape = 'f32[16,96]{1,0:T(8,128)}', space=vmem, size = 0x2000, scoped, tag = 'scratch operand']
  %s0 = inlined_call_operand.hbm [shape: f32[16,32], index: 0, kind: input, shape index: {}]
  %s1 = inlined_call_operand.hbm [shape: bf16[32,96], index: 1, kind: input, shape index: {}]
  %s2 = inlined_call_operand.vmem [shape: f32[1,96], index: 2, kind: input, shape index: {}]
  %s3 = inlined_call_operand.hbm [shape: f32[16,96], index: 3, kind: output, shape index: {}]
  %s4 = sld [smem:[#allocation0]]
  $region38: #{tpu_custom_call.1} parent=0
    _
  %s6 = ssub.s32 1, %s4
  %s7 = scalar_select 0, %s6, %s4
  $region1: #{tpu_custom_call.1} parent=0
    #allocation3 [shape = 'u8[8192]{0}', space=vmem, size = 0x2000, scoped, tag = 'input window, operand 0, single buffered']
    #allocation4 [shape = 's32[1]{0}', space=sflag, size = 0x4, scoped, tag = 'scoped memory for tpu_custom_call.1']
    #allocation5 [shape = 's32[1]{0}', space=sflag, size = 0x4, scoped, tag = 'scoped memory for tpu_custom_call.1']
    #allocation6 [shape = 'u8[8192]{0}', space=vmem, size = 0x2000, scoped, tag = 'input window, operand 1, single buffered']
    #allocation7 [shape = 's32[1]{0}', space=sflag, size = 0x4, scoped, tag = 'scoped memory for tpu_custom_call.1']
    #allocation8 [shape = 'u8[8192]{0}', space=vmem, size = 0x2000, scoped, tag = 'output window, operand 0, single buffered']
    %8 = vsyncpa [#allocation4], 0
    %9 = vsyncpa [#allocation7], 0
    %10 = vsyncpa [#allocation5], 0
    // Predicated region
    $region2: #{tpu_custom_call.1} parent=1 // pred_check
      _
    $region3: #{tpu_custom_call.1} parent=1 // pred_check_branch
      %12 = sbr.rel (0) target = $region5
    $region4: #{tpu_custom_call.1} parent=1 // pred_region
      %14 = vsyncadd [#allocation4], 0
      %s15 = sshll.u32 %s0, 4
      %s16 = int_to_ptr.hbm [resolvable:$true] %s15
      %s17 = sshll.u32 [#allocation3], 4
      %s18 = int_to_ptr.vmem [resolvable:$true] %s17
      %23 = dma.hbm_to_vmem [thread:$0]  %s16, 256, %s18, [#allocation4], 128, 128, 8
    $region5: #{tpu_custom_call.1} parent=1 // pred_fallthru
      _
    // Predicated region
    $region6: #{tpu_custom_call.1} parent=1 // pred_check
      _
    $region7: #{tpu_custom_call.1} parent=1 // pred_check_branch
      %25 = sbr.rel (0) target = $region9
    $region8: #{tpu_custom_call.1} parent=1 // pred_region
      %27 = vsyncadd [#allocation7], 0
      %s28 = sshll.u32 %s1, 4
      %s29 = int_to_ptr.hbm [resolvable:$true] %s28
      %s30 = sshll.u32 [#allocation6], 4
      %s31 = int_to_ptr.vmem [resolvable:$true] %s30
      %36 = dma.hbm_to_vmem [thread:$0]  %s29, 256, %s31, [#allocation7], 64, 64, 4
    $region9: #{tpu_custom_call.1} parent=1 // pred_fallthru
      _
    // Predicated region
    $region10: #{tpu_custom_call.1} parent=1 // pred_check
      _
    $region11: #{tpu_custom_call.1} parent=1 // pred_check_branch
      %38 = sbr.rel (0) target = $region13
    $region12: #{tpu_custom_call.1} parent=1 // pred_region
      _
    $region13: #{tpu_custom_call.1} parent=1 // pred_fallthru
      _
    // Predicated region
    $region14: #{tpu_custom_call.1} parent=1 // pred_check
      _
    $region15: #{tpu_custom_call.1} parent=1 // pred_check_branch
      %40 = sbr.rel (0) target = $region17
    $region16: #{tpu_custom_call.1} parent=1 // pred_region
      %42 = dma.done [#allocation4], 256
    $region17: #{tpu_custom_call.1} parent=1 // pred_fallthru
      _
    // Predicated region
    $region18: #{tpu_custom_call.1} parent=1 // pred_check
      _
    $region19: #{tpu_custom_call.1} parent=1 // pred_check_branch
      %44 = sbr.rel (0) target = $region21
    $region20: #{tpu_custom_call.1} parent=1 // pred_region
      %46 = dma.done [#allocation7], 256
    $region21: #{tpu_custom_call.1} parent=1 // pred_fallthru
      _
    %p48 = scmp.eq.s32.totalorder 0, 0
    // Predicated region
    $region22: #{tpu_custom_call.1} parent=1 // pred_check
      %p49 = pneg %p48
    $region23: #{tpu_custom_call.1} parent=1 // pred_check_branch
      %51 = sbr.rel (%p49) target = $region25
    $region24: #{tpu_custom_call.1} parent=1 // pred_region
      %vm52 = vcmask 785408
      %53 = vst.msk [vmem:[#allocation2] sm:$0xff] %vm52, 0.0
      %54 = vst.msk [vmem:[#allocation2 + $0x8] sm:$0xff] %vm52, 0.0
    $region25: #{tpu_custom_call.1} parent=1 // pred_fallthru
      _
    %v55 = vld [vmem:[#allocation2] sm:$0xff]
    %v56 = vld [vmem:[#allocation2 + $0x8] sm:$0xff]
    %v57 = vld [vmem:[#allocation3] sm:$0xff]
    %v58 = vld [vmem:[#allocation3 + $0x8] sm:$0xff]
    %v59 = vpack.c.bf16 %v58, %v57
    %v60 = vld [vmem:[#allocation6] sm:$0xf]
    %v61 = vld [vmem:[#allocation6 + $0x4] sm:$0xf]
    %v62 = vld [vmem:[#allocation6 + $0x8] sm:$0xf]
    %v63 = vld [vmem:[#allocation6 + $0xc] sm:$0xf]
    %v68 = vunpack.c.l.b16 %v60
    %v69 = vunpack.c.l.b16 %v61
    %v70 = vunpack.c.l.b16 %v62
    %v71 = vunpack.c.l.b16 %v63
    %v72 = vpack.c.b16 %v69, %v68
    %v73 = vpack.c.b16 %v71, %v70
    %vm76 = vcmask 261120
    %v78 = vsel %vm76, %v59, 0
    %80 = vmatpush.bf16.msra.mxu0 0
    %81 = vmatpush.bf16.msra.mxu0 0
    %82 = vmatpush.bf16.msra.mxu0 0
    %83 = vmatpush.bf16.msra.mxu0 0
    %84 = vmatpush.bf16.msra.mxu0 0
    %85 = vmatpush.bf16.msra.mxu0 0
    %86 = vmatpush.bf16.msra.mxu0 %v73
    %87 = vmatpush.bf16.msra.mxu0 %v72
    %88 = vmatmul.bf16.gmra.mxu0 %v78
    %v89 = vpop.f32.mrf.mxu0
    %v90 = vadd.f32 0.0, %v89
    %v91 = vpop.f32.mrf.mxu0
    %v92 = vadd.f32 0.0, %v91
    %93 = vdwg.mxu0
    %v94 = vadd.f32 %v55, %v90
    %v95 = vadd.f32 %v56, %v92
    %vm96 = vcmask 785408
    %97 = vst.msk [vmem:[#allocation2] sm:$0xff] %vm96, %v94
    %98 = vst.msk [vmem:[#allocation2 + $0x8] sm:$0xff] %vm96, %v95
    // Predicated region
    $region26: #{tpu_custom_call.1} parent=1 // pred_check
      %p99 = pneg %p48
    $region27: #{tpu_custom_call.1} parent=1 // pred_check_branch
      %101 = sbr.rel (%p99) target = $region29
    $region28: #{tpu_custom_call.1} parent=1 // pred_region
      %v102 = vld [vmem:[#allocation2] sm:$0xff]
      %v103 = vld [vmem:[#allocation2 + $0x8] sm:$0xff]
      %v104 = vld [vmem:[%s2] sm:$0x1]
      %v106 = vperm.slane %v104, 0
      %v108 = vadd.f32 %v102, %v106
      %v109 = vadd.f32 %v103, %v106
      %110 = vst.msk [vmem:[#allocation8] sm:$0xff] %vm96, %v108
      %111 = vst.msk [vmem:[#allocation8 + $0x8] sm:$0xff] %vm96, %v109
    $region29: #{tpu_custom_call.1} parent=1 // pred_fallthru
      _
    // Predicated region
    $region30: #{tpu_custom_call.1} parent=1 // pred_check
      _
    $region31: #{tpu_custom_call.1} parent=1 // pred_check_branch
      %113 = sbr.rel (0) target = $region33
    $region32: #{tpu_custom_call.1} parent=1 // pred_region
      %115 = vsyncadd [#allocation5], 0
      %s116 = sshll.u32 [#allocation8], 4
      %s117 = int_to_ptr.vmem [resolvable:$true] %s116
      %s118 = sshll.u32 %s3, 4
      %s119 = int_to_ptr.hbm [resolvable:$true] %s118
      %124 = dma.vmem_to_hbm [thread:$0]  %s117, 256, %s119, [#allocation5], 128, 128, 8
    $region33: #{tpu_custom_call.1} parent=1 // pred_fallthru
      _
    // Predicated region
    $region34: #{tpu_custom_call.1} parent=1 // pred_check
      _
    $region35: #{tpu_custom_call.1} parent=1 // pred_check_branch
      %126 = sbr.rel (0) target = $region37
    $region36: #{tpu_custom_call.1} parent=1 // pred_region
      %128 = dma.done [#allocation5], 256
    $region37: #{tpu_custom_call.1} parent=1 // pred_fallthru
      _
    %129 = vsyncpa [#allocation4], 1
    %130 = vsyncpa [#allocation7], 1
    %131 = vsyncpa [#allocation5], 1

</llo_original>
